<compile_context>
chip_gen: v5e
topology: v5e:2x2
jax: 0.10.0
libtpu: 0.0.40
codegen_flags: <defaults>
</compile_context>

<pallas_src>
import jax
import jax.numpy as jnp
from jax.experimental import pallas as pl
from jax.experimental.pallas import tpu as pltpu


# ---------------------------------------------------------------------------
# Kernel
# ---------------------------------------------------------------------------
def generator_kernel(x_ref, w1blk_ref, w2row_ref, b1_ref, b2_ref, out_ref):
    # x_ref:     (TB, S*D)  batch tile of x, trailing dims flattened row-major
    # w1blk_ref: (S*D, S)   block-diagonal proj1 weight (resident in VMEM)
    # w2row_ref: (1, S)     proj2 weight as a row (f32)
    # b1_ref:    (1, 1)     proj1 bias (SMEM scalar)
    # b2_ref:    (1, 1)     proj2 bias (SMEM scalar)
    # out_ref:   (1, TB)    lane-dense output tile (batch along lanes)

    # proj1 on the MXU: (TB, S*D) @ (S*D, S) -> (TB, S), f32 accumulation.
    h = jnp.dot(x_ref[...], w1blk_ref[...], preferred_element_type=jnp.float32)
    h = h + b1_ref[0, 0]

    # leaky_relu (slope 0.01): one VALU max instead of cmp+select.
    a = jnp.maximum(h, 0.01 * h)

    # proj2 as an MXU K-reduction producing a lane-dense row:
    #   (1, S) x (TB, S)^T -> (1, TB)
    out = jnp.einsum("os,bs->ob", w2row_ref[...], a,
                     preferred_element_type=jnp.float32)
    out_ref[...] = (out + b2_ref[0, 0]).astype(out_ref.dtype)


# ---------------------------------------------------------------------------
# Host-side planning / weight layout prep
# ---------------------------------------------------------------------------
def _vmem_budgets():
    """(physical_vmem_bytes, per-kernel total budget) per TPU generation."""
    try:
        kind = jax.devices()[0].device_kind.lower()
    except Exception:  # pragma: no cover
        kind = ""
    if "v7" in kind or "7x" in kind:
        return 64 << 20, 52 << 20          # v7x: 64 MiB per TensorCore
    if "v5" in kind or "v6" in kind:
        return 128 << 20, 96 << 20         # v5e / v6e: 128 MiB
    return 64 << 20, 48 << 20              # unknown: conservative


def _tiling_plan(B, S, D, x_itemsize, w_itemsize, *, x_buffers=2, block_b=None):
    """Pick the batch tile TB and an explicit VMEM limit.

    Counts the WHOLE footprint: x tile buffers, resident W1blk (x2 for the
    runtime's buffering), (TB, S) f32 intermediates, the (1, TB) output
    block, plus compiler-scratch margin.
    """
    phys, total_budget = _vmem_budgets()

    w1blk_bytes = S * D * S * w_itemsize
    if 2 * w1blk_bytes > total_budget // 4:
        # TODO(synk): for large out_size switch to a per-(b, s)-row matvec
        # formulation; the block-diagonal layout inflates W1blk as S^2 * D.
        raise NotImplementedError(
            "out_size too large for the block-diagonal proj1 layout")

    fixed = 2 * w1blk_bytes + 2 * (S * 4) + (2 << 20)    # weights + scratch
    per_row = (S * D * x_itemsize * x_buffers            # x tile buffers
               + 2 * S * 4                               # h, a intermediates
               + 2 * 4)                                  # output block (x2)

    if block_b is not None:
        tb = int(block_b)
    else:
        tb = (total_budget - fixed) // per_row
        if tb >= B:
            if B >= 256:
                # Keep >= 2 grid steps so v7x's two TensorCores both get work
                # (free on v5e/v6e).
                half = (B + 1) // 2
                tb = min(B, ((half + 127) // 128) * 128)
            else:
                tb = B
        else:
            tb = max(128, (tb // 128) * 128)
            tb = min(tb, B)

    footprint = fixed + tb * per_row
    vmem_limit = int(min(phys - (4 << 20),
                         max(footprint + (8 << 20), 32 << 20)))
    return tb, vmem_limit


def prepare_generator_params(w1, b1, w2, b2, *, x_dtype=jnp.float32):
    """One-off weight layout prep (call once per weight update, not per step).

    Returns (w1blk, w2row, b1s, b2s) with w1blk already in the streaming
    dtype of x (bf16 streaming keeps MXU accumulation in f32).
    """
    D = w1.shape[0]
    S = w2.shape[0]
    eye = jnp.eye(S, dtype=jnp.float32)
    # Block-diagonal (S*D, S): row s*D+d, col j  ->  w1[d] if s == j else 0.
    w1blk = (eye[:, None, :] * w1.reshape(1, D, 1).astype(jnp.float32))
    w1blk = w1blk.reshape(S * D, S).astype(x_dtype)
    w2row = w2.reshape(1, S).astype(jnp.float32)
    b1s = b1.reshape(1, 1).astype(jnp.float32)
    b2s = b2.reshape(1, 1).astype(jnp.float32)
    return w1blk, w2row, b1s, b2s


# ---------------------------------------------------------------------------
# Forward
# ---------------------------------------------------------------------------
def generator_forward(x, params, *, block_b=None, x_buffers=2):
    """x: (B, out_size, d_model); params from prepare_generator_params."""
    w1blk, w2row, b1s, b2s = params
    B, S, D = x.shape
    if w1blk.shape != (S * D, S):
        raise ValueError(f"param/ input shape mismatch: {w1blk.shape} vs {(S*D, S)}")
    if w1blk.dtype != x.dtype:
        w1blk = w1blk.astype(x.dtype)   # keep MXU operands in the same dtype

    TB, vmem_limit = _tiling_plan(
        B, S, D, x.dtype.itemsize, w1blk.dtype.itemsize,
        x_buffers=x_buffers, block_b=block_b)

    x_flat = x.reshape(B, S * D)        # row-major flatten, no copy
    grid = (pl.cdiv(B, TB),)

    if x_buffers != 2:
        x_spec = pl.BlockSpec((TB, S * D), lambda i: (i, 0),
                              pipeline_mode=pl.Buffered(x_buffers))
    else:
        x_spec = pl.BlockSpec((TB, S * D), lambda i: (i, 0))

    out_row = pl.pallas_call(
        generator_kernel,
        out_shape=jax.ShapeDtypeStruct((1, B), jnp.float32),
        grid=grid,
        in_specs=[
            # x: batch-tiled, automatically pipelined / multi-buffered.
            x_spec,
            # Weights: constant block index -> fetched once, stay resident.
            pl.BlockSpec((S * D, S), lambda i: (0, 0)),
            pl.BlockSpec((1, S), lambda i: (0, 0)),
            # Biases: SMEM scalars.
            pl.BlockSpec((1, 1), lambda i: (0, 0),
                         memory_space=pltpu.MemorySpace.SMEM),
            pl.BlockSpec((1, 1), lambda i: (0, 0),
                         memory_space=pltpu.MemorySpace.SMEM),
        ],
        # Lane-dense output: batch along the 128-lane axis.
        out_specs=pl.BlockSpec((1, TB), lambda i: (0, i)),
        compiler_params=pltpu.CompilerParams(
            dimension_semantics=("parallel",),
            vmem_limit_bytes=vmem_limit),
    )(x_flat, w1blk, w2row, b1s, b2s)

    return out_row.reshape(B, 1)


def generator_reference(x, w1, b1, w2, b2):
    h = jnp.einsum("bsd,do->bso", x, w1) + b1       # proj1 -> (B, S, 1)
    a = jnp.where(h >= 0, h, 0.01 * h)              # leaky_relu
    flat = a.reshape(x.shape[0], -1)                # (B, out_size)
    return flat @ w2 + b2                           # proj2 -> (B, 1)


# ---------------------------------------------------------------------------
# Self-test
# ---------------------------------------------------------------------------
if __name__ == "__main__":
    d_model, out_size, batch = 32, 8, 4

    key = jax.random.PRNGKey(0)
    kx, kw1, kb1, kw2, kb2, kx2, kx3 = jax.random.split(key, 7)

    # Deterministic "PyTorch-like" Linear init: U(-1/sqrt(fan_in), 1/sqrt(fan_in))
    bound1 = 1.0 / (d_model ** 0.5)
    bound2 = 1.0 / (out_size ** 0.5)
    w1 = jax.random.uniform(kw1, (d_model, 1), jnp.float32, -bound1, bound1)
    b1 = jax.random.uniform(kb1, (1,), jnp.float32, -bound1, bound1)
    w2 = jax.random.uniform(kw2, (out_size, 1), jnp.float32, -bound2, bound2)
    b2 = jax.random.uniform(kb2, (1,), jnp.float32, -bound2, bound2)

    # Weight-layout prep is hoisted: built once, reused across forward calls.
    params_f32 = prepare_generator_params(w1, b1, w2, b2, x_dtype=jnp.float32)

    # 1) Small single-tile check.
    x = jax.random.normal(kx, (batch, out_size, d_model), jnp.float32)
    out = jax.block_until_ready(generator_forward(x, params_f32))
    ref = generator_reference(x, w1, b1, w2, b2)
    if out.shape != (batch, 1):
        raise AssertionError(f"bad output shape {out.shape}")
    if not jnp.allclose(out, ref, atol=1e-5, rtol=1e-5):
        raise AssertionError(f"mismatch (small): pallas={out} ref={ref}")

    # 2) Multi-tile check with a partial last tile (B % TB != 0):
    #    B=300 is split by the tiling plan into two 256-wide tiles (grid=(2,)),
    #    exercising the pipelined path and output-lane masking.
    big_batch = 300
    xb = jax.random.normal(kx2, (big_batch, out_size, d_model), jnp.float32)
    outb = jax.block_until_ready(generator_forward(xb, params_f32))
    refb = generator_reference(xb, w1, b1, w2, b2)
    if outb.shape != (big_batch, 1):
        raise AssertionError(f"bad output shape {outb.shape}")
    if not jnp.allclose(outb, refb, atol=1e-5, rtol=1e-5):
        raise AssertionError("mismatch (tiled / partial-tile path)")

    # 3) bf16 streaming path: x and W1blk in bfloat16, f32 MXU accumulation.
    params_bf16 = prepare_generator_params(w1, b1, w2, b2,
                                           x_dtype=jnp.bfloat16)
    xc = jax.random.normal(kx3, (128, out_size, d_model),
                           jnp.float32).astype(jnp.bfloat16)
    outc = jax.block_until_ready(generator_forward(xc, params_bf16))
    refc = generator_reference(xc.astype(jnp.float32),
                               w1.astype(jnp.bfloat16).astype(jnp.float32),
                               b1, w2, b2)
    if outc.shape != (128, 1):
        raise AssertionError(f"bad output shape {outc.shape}")
    if not jnp.allclose(outc, refc, atol=1e-3, rtol=1e-3):
        raise AssertionError("mismatch (bf16 streaming path)")

    print("KERNEL_OK")
</pallas_src>

<mosaic_0001>
module attributes {stable_mosaic.version = 11 : i64} {
  func.func @generator_kernel(%arg0: i32, %arg1: memref<4x256xf32, #tpu.memory_space<vmem>>, %arg2: memref<256x8xf32, #tpu.memory_space<vmem>>, %arg3: memref<1x8xf32, #tpu.memory_space<vmem>>, %arg4: memref<1x1xf32, #tpu.memory_space<smem>>, %arg5: memref<1x1xf32, #tpu.memory_space<smem>>, %arg6: memref<1x4xf32, #tpu.memory_space<vmem>>) attributes {dimension_semantics = [#tpu.dimension_semantics<parallel>], iteration_bounds = array<i64: 1>, scalar_prefetch = 0 : i64, scratch_operands = 0 : i64, tpu.core_type = #tpu.core_type<tc>, window_params = [{transform_indices = @transform_0, window_bounds = array<i64: 4, 256>}, {pipeline_mode = #tpu.pipeline_mode<synchronous>, transform_indices = @transform_1, window_bounds = array<i64: 256, 8>}, {pipeline_mode = #tpu.pipeline_mode<synchronous>, transform_indices = @transform_2, window_bounds = array<i64: 1, 8>}, {transform_indices = @transform_3, window_bounds = array<i64: 1, 1>}, {transform_indices = @transform_4, window_bounds = array<i64: 1, 1>}, {transform_indices = @transform_5, window_bounds = array<i64: 1, 4>}]} {
    %c0 = arith.constant 0 : index
    %c0_0 = arith.constant 0 : index
    %0 = vector.load %arg1[%c0, %c0_0] : memref<4x256xf32, #tpu.memory_space<vmem>>, vector<4x256xf32>
    %c0_1 = arith.constant 0 : index
    %c0_2 = arith.constant 0 : index
    %1 = vector.load %arg2[%c0_1, %c0_2] : memref<256x8xf32, #tpu.memory_space<vmem>>, vector<256x8xf32>
    %cst = arith.constant dense<0.000000e+00> : vector<4x8xf32>
    %2 = tpu.matmul %0, %1, %cst {dimension_numbers = #tpu.dot_dimension_numbers<[1], [0], [0], [1], [0, 0, 1, 1], [], []>} : vector<4x256xf32>, vector<256x8xf32>, vector<4x8xf32> -> vector<4x8xf32>
    %c0_3 = arith.constant 0 : index
    %c0_4 = arith.constant 0 : index
    %3 = memref.load %arg4[%c0_3, %c0_4] : memref<1x1xf32, #tpu.memory_space<smem>>
    %4 = vector.broadcast %3 : f32 to vector<4x8xf32>
    %5 = arith.addf %2, %4 : vector<4x8xf32>
    %cst_5 = arith.constant 0.00999999977 : f32
    %6 = vector.broadcast %cst_5 : f32 to vector<4x8xf32>
    %7 = arith.mulf %6, %5 : vector<4x8xf32>
    %8 = arith.maximumf %5, %7 : vector<4x8xf32>
    %c0_6 = arith.constant 0 : index
    %c0_7 = arith.constant 0 : index
    %9 = vector.load %arg3[%c0_6, %c0_7] : memref<1x8xf32, #tpu.memory_space<vmem>>, vector<1x8xf32>
    "tpu.trace_start"() <{level = 10 : i32, message = "os,bs->ob"}> : () -> ()
    %cst_8 = arith.constant dense<0.000000e+00> : vector<1x4xf32>
    %10 = tpu.matmul %9, %8, %cst_8 {dimension_numbers = #tpu.dot_dimension_numbers<[1], [1], [0], [0], [0, 0, 1, 0], [], []>} : vector<1x8xf32>, vector<4x8xf32>, vector<1x4xf32> -> vector<1x4xf32>
    "tpu.trace_stop"() : () -> ()
    %c0_9 = arith.constant 0 : index
    %c0_10 = arith.constant 0 : index
    %11 = memref.load %arg5[%c0_9, %c0_10] : memref<1x1xf32, #tpu.memory_space<smem>>
    %12 = vector.broadcast %11 : f32 to vector<1x4xf32>
    %13 = arith.addf %10, %12 : vector<1x4xf32>
    %c0_11 = arith.constant 0 : index
    %c0_12 = arith.constant 0 : index
    %14 = vector.load %arg6[%c0_11, %c0_12] : memref<1x4xf32, #tpu.memory_space<vmem>>, vector<1x4xf32>
    tpu.vector_store %arg6[%c0_11, %c0_12], %13 {strides = array<i32>} : memref<1x4xf32, #tpu.memory_space<vmem>>, vector<1x4xf32>,
    return
  }
  func.func @transform_0(%arg0: i32) -> (i32, i32) {
    %c0_i32 = arith.constant 0 : i32
    %c0_i32_0 = arith.constant 0 : i32
    return %arg0, %c0_i32 : i32, i32
  }
  func.func @transform_1(%arg0: i32) -> (i32, i32) {
    %c0_i32 = arith.constant 0 : i32
    %c0_i32_0 = arith.constant 0 : i32
    %c0_i32_1 = arith.constant 0 : i32
    return %c0_i32, %c0_i32_0 : i32, i32
  }
  func.func @transform_2(%arg0: i32) -> (i32, i32) {
    %c0_i32 = arith.constant 0 : i32
    %c0_i32_0 = arith.constant 0 : i32
    %c0_i32_1 = arith.constant 0 : i32
    return %c0_i32, %c0_i32_0 : i32, i32
  }
  func.func @transform_3(%arg0: i32) -> (i32, i32) {
    %c0_i32 = arith.constant 0 : i32
    %c0_i32_0 = arith.constant 0 : i32
    %c0_i32_1 = arith.constant 0 : i32
    return %c0_i32, %c0_i32_0 : i32, i32
  }
  func.func @transform_4(%arg0: i32) -> (i32, i32) {
    %c0_i32 = arith.constant 0 : i32
    %c0_i32_0 = arith.constant 0 : i32
    %c0_i32_1 = arith.constant 0 : i32
    return %c0_i32, %c0_i32_0 : i32, i32
  }
  func.func @transform_5(%arg0: i32) -> (i32, i32) {
    %c0_i32 = arith.constant 0 : i32
    %c0_i32_0 = arith.constant 0 : i32
    return %c0_i32, %arg0 : i32, i32
  }
}

</mosaic_0001>

<llo_original>
// kernel: tpu_custom_call.1
$region0: #{tpu_custom_call.1}
  #allocation0 [shape = 'u32[]', space=smem, size = 0x4, offset = 0x4, fixed_abs, tag = 'smem constant byte address 0x4 - core index']
  #allocation1 [shape = 'u32[72,128]{1,0:T(1,128)}', space=vmem, size = 0x9000, scoped, tag = 'internal scratch']
  #allocation2 [shape = 'f32[1,1]{1,0:T(1,128)S(6)}', space=smem, size = 0x200, scoped, tag = 'scoped memory for tpu_custom_call.1']
  #allocation3 [shape = 'f32[1,1]{1,0:T(1,128)S(6)}', space=smem, size = 0x200, scoped, tag = 'scoped memory for tpu_custom_call.1']
  %s0 = inlined_call_operand.vmem [shape: f32[4,256], index: 0, kind: input, shape index: {}]
  %s1 = inlined_call_operand.vmem [shape: f32[256,8], index: 1, kind: input, shape index: {}]
  %s2 = inlined_call_operand.vmem [shape: f32[1,8], index: 2, kind: input, shape index: {}]
  %s3 = inlined_call_operand.<no memory space> [shape: f32[1,1], index: 3, kind: input, shape index: {}]
  %s4 = inlined_call_operand.<no memory space> [shape: f32[1,1], index: 4, kind: input, shape index: {}]
  %s5 = inlined_call_operand.hbm [shape: f32[1,4], index: 5, kind: output, shape index: {}]
  %s6 = sld [smem:[#allocation0]]
  $region30: #{tpu_custom_call.1} parent=0
    _
  %s8 = ssub.s32 1, %s6
  %s9 = scalar_select 0, %s8, %s6
  %10 = sst [smem:[#allocation2]] %s3
  %11 = sst [smem:[#allocation3]] %s4
  $region1: #{tpu_custom_call.1} parent=0
    #allocation4 [shape = 'u8[512]{0}', space=vmem, size = 0x400, scoped, tag = 'output window, operand 0, single buffered']
    #allocation5 [shape = 's32[1]{0}', space=sflag, size = 0x4, scoped, tag = 'scoped memory for tpu_custom_call.1']
    %12 = vsyncpa [#allocation5], 0
    // Predicated region
    $region2: #{tpu_custom_call.1} parent=1 // pred_check
      _
    $region3: #{tpu_custom_call.1} parent=1 // pred_check_branch
      %14 = sbr.rel (0) target = $region5
    $region4: #{tpu_custom_call.1} parent=1 // pred_region
      _
    $region5: #{tpu_custom_call.1} parent=1 // pred_fallthru
      _
    // Predicated region
    $region6: #{tpu_custom_call.1} parent=1 // pred_check
      _
    $region7: #{tpu_custom_call.1} parent=1 // pred_check_branch
      %16 = sbr.rel (0) target = $region9
    $region8: #{tpu_custom_call.1} parent=1 // pred_region
      _
    $region9: #{tpu_custom_call.1} parent=1 // pred_fallthru
      _
    // Predicated region
    $region10: #{tpu_custom_call.1} parent=1 // pred_check
      _
    $region11: #{tpu_custom_call.1} parent=1 // pred_check_branch
      %18 = sbr.rel (0) target = $region13
    $region12: #{tpu_custom_call.1} parent=1 // pred_region
      _
    $region13: #{tpu_custom_call.1} parent=1 // pred_fallthru
      _
    // Predicated region
    $region14: #{tpu_custom_call.1} parent=1 // pred_check
      _
    $region15: #{tpu_custom_call.1} parent=1 // pred_check_branch
      %20 = sbr.rel (0) target = $region17
    $region16: #{tpu_custom_call.1} parent=1 // pred_region
      _
    $region17: #{tpu_custom_call.1} parent=1 // pred_fallthru
      _
    // Predicated region
    $region18: #{tpu_custom_call.1} parent=1 // pred_check
      _
    $region19: #{tpu_custom_call.1} parent=1 // pred_check_branch
      %22 = sbr.rel (0) target = $region21
    $region20: #{tpu_custom_call.1} parent=1 // pred_region
      _
    $region21: #{tpu_custom_call.1} parent=1 // pred_fallthru
      _
    %v23 = vld [vmem:[%s0] sm:$0xff]
    %v24 = vld [vmem:[%s1] sm:$0xff]
    %v25 = vld [vmem:[%s1 + $0x8] sm:$0xff]
    %v26 = vld [vmem:[%s1 + $0x10] sm:$0xff]
    %v27 = vld [vmem:[%s1 + $0x18] sm:$0xff]
    %v28 = vld [vmem:[%s1 + $0x20] sm:$0xff]
    %v29 = vld [vmem:[%s1 + $0x28] sm:$0xff]
    %v30 = vld [vmem:[%s1 + $0x30] sm:$0xff]
    %v31 = vld [vmem:[%s1 + $0x38] sm:$0xff]
    %v32 = vld [vmem:[%s1 + $0x40] sm:$0xff]
    %v33 = vld [vmem:[%s1 + $0x48] sm:$0xff]
    %v34 = vld [vmem:[%s1 + $0x50] sm:$0xff]
    %v35 = vld [vmem:[%s1 + $0x58] sm:$0xff]
    %v36 = vld [vmem:[%s1 + $0x60] sm:$0xff]
    %v37 = vld [vmem:[%s1 + $0x68] sm:$0xff]
    %v38 = vld [vmem:[%s1 + $0x70] sm:$0xff]
    %v39 = vld [vmem:[%s1 + $0x78] sm:$0xff]
    %v40 = vld [vmem:[%s1 + $0x80] sm:$0xff]
    %v41 = vld [vmem:[%s1 + $0x88] sm:$0xff]
    %v42 = vld [vmem:[%s1 + $0x90] sm:$0xff]
    %v43 = vld [vmem:[%s1 + $0x98] sm:$0xff]
    %v44 = vld [vmem:[%s1 + $0xa0] sm:$0xff]
    %v45 = vld [vmem:[%s1 + $0xa8] sm:$0xff]
    %v46 = vld [vmem:[%s1 + $0xb0] sm:$0xff]
    %v47 = vld [vmem:[%s1 + $0xb8] sm:$0xff]
    %v48 = vld [vmem:[%s1 + $0xc0] sm:$0xff]
    %v49 = vld [vmem:[%s1 + $0xc8] sm:$0xff]
    %v50 = vld [vmem:[%s1 + $0xd0] sm:$0xff]
    %v51 = vld [vmem:[%s1 + $0xd8] sm:$0xff]
    %v52 = vld [vmem:[%s1 + $0xe0] sm:$0xff]
    %v53 = vld [vmem:[%s1 + $0xe8] sm:$0xff]
    %v54 = vld [vmem:[%s1 + $0xf0] sm:$0xff]
    %v55 = vld [vmem:[%s1 + $0xf8] sm:$0xff]
    %s56 = sld [smem:[#allocation2]]
    %v57 = vstv %s56
    %59 = vst [vmem:[#allocation1] ss:$2 sm:$0xff] %v23
    %v60 = vld.sshfl [vmem:[#allocation1] sm:$0xff pattern:$0x75316420]
    %v61 = vld.sshfl [vmem:[#allocation1 + $0x8] sm:$0xff pattern:$0x75316420]
    %64 = vmatpush.msra.mxu0 %v39
    %65 = vmatpush.msra.mxu0 %v38
    %66 = vmatpush.msra.mxu0 %v37
    %67 = vmatpush.msra.mxu0 %v36
    %68 = vmatpush.msra.mxu0 %v35
    %69 = vmatpush.msra.mxu0 %v34
    %70 = vmatpush.msra.mxu0 %v33
    %71 = vmatpush.msra.mxu0 %v32
    %72 = vmatpush.msra.mxu0 %v31
    %73 = vmatpush.msra.mxu0 %v30
    %74 = vmatpush.msra.mxu0 %v29
    %75 = vmatpush.msra.mxu0 %v28
    %76 = vmatpush.msra.mxu0 %v27
    %77 = vmatpush.msra.mxu0 %v26
    %78 = vmatpush.msra.mxu0 %v25
    %79 = vmatpush.msra.mxu0 %v24
    %80 = vmatmul.f32.gmra.mxu0 %v60
    %v81 = vpop.f32.mrf.mxu0
    %v82 = vadd.f32 %v57, %v81
    %83 = vdwg.mxu0
    %84 = vmatpush.msra.mxu0 %v55
    %85 = vmatpush.msra.mxu0 %v54
    %86 = vmatpush.msra.mxu0 %v53
    %87 = vmatpush.msra.mxu0 %v52
    %88 = vmatpush.msra.mxu0 %v51
    %89 = vmatpush.msra.mxu0 %v50
    %90 = vmatpush.msra.mxu0 %v49
    %91 = vmatpush.msra.mxu0 %v48
    %92 = vmatpush.msra.mxu0 %v47
    %93 = vmatpush.msra.mxu0 %v46
    %94 = vmatpush.msra.mxu0 %v45
    %95 = vmatpush.msra.mxu0 %v44
    %96 = vmatpush.msra.mxu0 %v43
    %97 = vmatpush.msra.mxu0 %v42
    %98 = vmatpush.msra.mxu0 %v41
    %99 = vmatpush.msra.mxu0 %v40
    %100 = vmatmul.f32.gmra.mxu0 %v61
    %v101 = vpop.f32.mrf.mxu0
    %v102 = vadd.f32 %v82, %v101
    %103 = vdwg.mxu0
    %v104 = vmul.f32 %v102, 0.01
    %v105 = vmax.f32 %v102, %v104
    %v106 = vld [vmem:[%s2] sm:$0x1]
    %s107 = sld [smem:[#allocation3]]
    %v108 = vstv %s107
    %vm109 = vcmask 64512
    %v111 = vsel %vm109, %v106, 0
    %v114 = vsel %vm109, %v105, 0
    %116 = vmatpush.xpose.msra.mxu0 0.0
    %117 = vmatpush.xpose.msra.mxu0 0.0
    %118 = vmatpush.xpose.msra.mxu0 0.0
    %119 = vmatpush.xpose.msra.mxu0 0.0
    %120 = vmatpush.xpose.msra.mxu0 0.0
    %121 = vmatpush.xpose.msra.mxu0 0.0
    %122 = vmatpush.xpose.msra.mxu0 0.0
    %123 = vmatpush.xpose.msra.mxu0 0.0
    %124 = vmatpush.xpose.msra.mxu0 0.0
    %125 = vmatpush.xpose.msra.mxu0 0.0
    %126 = vmatpush.xpose.msra.mxu0 0.0
    %127 = vmatpush.xpose.msra.mxu0 0.0
    %128 = vmatpush.xpose.msra.mxu0 0.0
    %129 = vmatpush.xpose.msra.mxu0 0.0
    %130 = vmatpush.xpose.msra.mxu0 0.0
    %131 = vmatpush.xpose.msra.mxu0 %v114
    %132 = vmatmul.f32.gmra.mxu0 %v111
    %v133 = vpop.f32.mrf.mxu0
    %v134 = vadd.f32 %v108, %v133
    %135 = vdwg.mxu0
    %vm136 = vcmask 24576
    %137 = vst.msk [vmem:[#allocation4] sm:$0x1] %vm136, %v134
    // Predicated region
    $region22: #{tpu_custom_call.1} parent=1 // pred_check
      _
    $region23: #{tpu_custom_call.1} parent=1 // pred_check_branch
      %139 = sbr.rel (0) target = $region25
    $region24: #{tpu_custom_call.1} parent=1 // pred_region
      %141 = vsyncadd [#allocation5], 0
      %s143 = sshll.u32 [#allocation4], 4
      %s144 = int_to_ptr.vmem [resolvable:$true] %s143
      %s145 = sshll.u32 %s5, 4
      %s146 = int_to_ptr.hbm [resolvable:$true] %s145
      %148 = dma.vmem_to_hbm [thread:$0]  %s144, 16, %s146, [#allocation5]
    $region25: #{tpu_custom_call.1} parent=1 // pred_fallthru
      _
    // Predicated region
    $region26: #{tpu_custom_call.1} parent=1 // pred_check
      _
    $region27: #{tpu_custom_call.1} parent=1 // pred_check_branch
      %150 = sbr.rel (0) target = $region29
    $region28: #{tpu_custom_call.1} parent=1 // pred_region
      %152 = dma.done [#allocation5], 16
    $region29: #{tpu_custom_call.1} parent=1 // pred_fallthru
      _
    %153 = vsyncpa [#allocation5], 1

</llo_original>
